<compile_context>
chip_gen: v6e
topology: v6e:2x2x1
jax: 0.10.0
libtpu: 0.0.40
codegen_flags: <defaults>
</compile_context>

<pallas_src>
import math
from functools import lru_cache, partial

import numpy as np
import jax
import jax.numpy as jnp
from jax.experimental import pallas as pl
from jax.experimental.pallas import tpu as pltpu

_LANES = 128
_TILE_BYTES = 2 * 1024 * 1024          # target bytes per output block
_VMEM_LIMIT = 32 * 1024 * 1024         # safe on v5e/v6e/v7x (<= physical VMEM)
_NEG_LOG = -math.log(10000.0)


def _round_up(a, b):
    return ((a + b - 1) // b) * b


# --------------------------------------------------------------------------
# Kernels
# --------------------------------------------------------------------------
def _pe_rows_kernel(o_ref, *, d_model):
    """Row-tiled path (d_model % 128 == 0): o_ref is a (tile_s, d_model) tile.

    Column-only quantities are hoisted to a (1, d_model) slab; the even/odd
    sin/cos choice is an exact parity select (no phase fold).
    """
    tile_s = o_ref.shape[0]
    i = pl.program_id(0)

    col = jax.lax.broadcasted_iota(jnp.int32, (1, d_model), 1)
    parity = col % 2                              # 0 -> sin column, 1 -> cos column
    even_col = (col - parity).astype(jnp.float32)
    inv_freq = jnp.exp(even_col * (_NEG_LOG / d_model))

    row = jax.lax.broadcasted_iota(jnp.int32, (tile_s, 1), 0).astype(jnp.float32)
    # Positions are exact in f32 up to 2^24 (far beyond realistic max_len).
    pos = (i * tile_s).astype(jnp.float32) + row
    angle = pos * inv_freq
    o_ref[...] = jnp.where(parity == 0, jnp.sin(angle), jnp.cos(angle))


def _pe_flat_kernel(pos_ref, col_ref, o_ref, *, d_model, pos_per_tile):
    """Lane-dense flat path: o_ref is a (tile_r, 128) slab of the row-major
    flattened (max_len, d_model) table.

    pos_ref / col_ref hold the host-precomputed (pos, col) decomposition of the
    flat index for the FIRST tile; every later tile sees the same (pos, col)
    pattern with pos shifted by a per-tile constant (tile_r*128 is a multiple
    of d_model by construction), so no vector integer div/mod is needed.
    """
    i = pl.program_id(0)

    col = col_ref[...]
    parity = jnp.bitwise_and(col, 1)
    even_col = (col - parity).astype(jnp.float32)
    inv_freq = jnp.exp(even_col * (_NEG_LOG / d_model))

    pos = pos_ref[...] + (i * pos_per_tile).astype(jnp.float32)
    angle = pos * inv_freq
    o_ref[...] = jnp.where(parity == 0, jnp.sin(angle), jnp.cos(angle))


# --------------------------------------------------------------------------
# Builders
# --------------------------------------------------------------------------
def _build_rows(d_model, max_len):
    """(tile_s, d_model) row tiles; lane-dense when d_model % 128 == 0."""
    row_bytes = d_model * 4
    tile_s = max(8, (_TILE_BYTES // row_bytes) // 8 * 8)   # ~2 MiB per block
    tile_s = min(tile_s, _round_up(max_len, 8))
    padded_len = _round_up(max_len, tile_s)

    table = pl.pallas_call(
        partial(_pe_rows_kernel, d_model=d_model),
        out_shape=jax.ShapeDtypeStruct((padded_len, d_model), jnp.float32),
        grid=(padded_len // tile_s,),
        out_specs=pl.BlockSpec((tile_s, d_model), lambda i: (i, 0)),
        compiler_params=pltpu.CompilerParams(
            dimension_semantics=("parallel",),
            vmem_limit_bytes=_VMEM_LIMIT,
        ),
    )()
    return table[:max_len, :]


def _build_flat(d_model, max_len, row_align):
    """Lane-dense (rows, 128) flat layout; reshaped to (max_len, d_model)."""
    rows_needed = pl.cdiv(max_len * d_model, _LANES)
    # Byte-budget tile, rounded to row_align (= lcm(8, period)) so each tile
    # covers a whole number of positions and of (8,128) sublane tiles.
    cap = max(row_align, (_TILE_BYTES // (_LANES * 4)) // row_align * row_align)
    tile_r = min(cap, _round_up(rows_needed, row_align))
    padded_rows = _round_up(rows_needed, tile_r)
    pos_per_tile = tile_r * _LANES // d_model       # exact by construction

    # Host-precomputed (pos, col) decomposition for one tile (exact integers).
    f = np.arange(tile_r * _LANES, dtype=np.int64)
    pos_slab = (f // d_model).astype(np.float32).reshape(tile_r, _LANES)
    col_slab = (f % d_model).astype(np.int32).reshape(tile_r, _LANES)

    flat = pl.pallas_call(
        partial(_pe_flat_kernel, d_model=d_model, pos_per_tile=pos_per_tile),
        out_shape=jax.ShapeDtypeStruct((padded_rows, _LANES), jnp.float32),
        grid=(padded_rows // tile_r,),
        in_specs=[
            pl.BlockSpec((tile_r, _LANES), lambda i: (0, 0)),   # constant block
            pl.BlockSpec((tile_r, _LANES), lambda i: (0, 0)),   # constant block
        ],
        out_specs=pl.BlockSpec((tile_r, _LANES), lambda i: (i, 0)),
        compiler_params=pltpu.CompilerParams(
            dimension_semantics=("parallel",),
            vmem_limit_bytes=_VMEM_LIMIT,
        ),
    )(jnp.asarray(pos_slab), jnp.asarray(col_slab))

    # Contiguous row-major reshape back to (positions, d_model), then trim pad.
    table = flat.reshape(padded_rows * _LANES // d_model, d_model)
    return table[:max_len, :]


def _build_pe_table(d_model, max_len):
    """Full (max_len, d_model) float32 PE table built with Pallas."""
    if d_model % _LANES == 0:
        return _build_rows(d_model, max_len)      # already lane-dense

    period_rows = d_model // math.gcd(d_model, _LANES)       # lcm(d,128)/128
    row_align = 8 * period_rows // math.gcd(8, period_rows)  # lcm(8, period)
    if row_align * _LANES * 4 > _TILE_BYTES:
        # Pathological alignment (huge period): fall back to row tiles so the
        # block stays inside the VMEM budget (masked stores, but correct).
        return _build_rows(d_model, max_len)
    return _build_flat(d_model, max_len, row_align)


@lru_cache(maxsize=None)
def _cached_pe_table(d_model, max_len):
    # The PE buffer is a constant: build once per (d_model, max_len) and reuse
    # across forward() calls (mirrors register_buffer in PyTorch).
    return jax.block_until_ready(_build_pe_table(d_model, max_len))


@lru_cache(maxsize=None)
def _cached_pe_slice(d_model, max_len, seq_len):
    table = _cached_pe_table(d_model, max_len)
    if seq_len >= max_len:
        return table
    return jax.block_until_ready(table[:seq_len, :])


# --------------------------------------------------------------------------
# Forward
# --------------------------------------------------------------------------
def positional_encoding_forward(x, d_model, max_len):
    """Mirrors PositionalEncoding(d_model, max_len).forward(x).

    x: (batch, seq_len) array; only its static seq_len is used.
    Returns: (min(seq_len, max_len), d_model) float32 (same as pe[:seq_len]).
    """
    assert d_model % 2 == 0, "d_model must be even (matches the PyTorch buffer)"
    _, seq_len = x.shape
    # Steady state: pure Python-cache hit, no per-call device dispatch.
    return _cached_pe_slice(d_model, max_len, min(seq_len, max_len))


# --------------------------------------------------------------------------
# Reference + self-test
# --------------------------------------------------------------------------
def _reference_pe(seq_len, d_model):
    position = jnp.arange(seq_len, dtype=jnp.float32)[:, None]
    div_term = jnp.exp(
        jnp.arange(0, d_model, 2, dtype=jnp.float32) * (_NEG_LOG / d_model)
    )
    pe = jnp.zeros((seq_len, d_model), jnp.float32)
    pe = pe.at[:, 0::2].set(jnp.sin(position * div_term))
    pe = pe.at[:, 1::2].set(jnp.cos(position * div_term))
    return pe


if __name__ == "__main__":
    key = jax.random.PRNGKey(0)

    # Case 1: primary small shapes (hidden=32, seq=8) -> lane-dense flat path.
    d_model, max_len = 32, 16
    batch, seq_len = 2, 8
    x = jax.random.normal(key, (batch, seq_len), dtype=jnp.float32)
    out = jax.block_until_ready(positional_encoding_forward(x, d_model, max_len))
    assert out.shape == (seq_len, d_model)
    assert out.dtype == jnp.float32
    assert jnp.allclose(out, _reference_pe(seq_len, d_model), atol=1e-5, rtol=1e-5)

    # Second call with a different seq_len exercises the cached-slice path.
    out_b = positional_encoding_forward(x[:, :5], d_model, max_len)
    assert jnp.allclose(out_b, _reference_pe(5, d_model), atol=1e-5, rtol=1e-5)

    # Case 2: d_model=40 (not aligned to 128) -> flat path, full-width stores.
    x2 = jax.random.normal(key, (2, 10), dtype=jnp.float32)
    out2 = jax.block_until_ready(positional_encoding_forward(x2, 40, 12))
    assert out2.shape == (10, 40)
    assert jnp.allclose(out2, _reference_pe(10, 40), atol=1e-5, rtol=1e-5)

    # Case 3: d_model=256 (multiple of 128) -> row-tiled lane-dense path.
    x3 = jax.random.normal(key, (2, 8), dtype=jnp.float32)
    out3 = jax.block_until_ready(positional_encoding_forward(x3, 256, 16))
    assert out3.shape == (8, 256)
    assert jnp.allclose(out3, _reference_pe(8, 256), atol=1e-5, rtol=1e-5)

    print("KERNEL_OK")
</pallas_src>

<mosaic_0001>
module attributes {stable_mosaic.version = 11 : i64} {
  func.func @_pe_flat_kernel(%arg0: i32, %arg1: memref<8x128xf32, #tpu.memory_space<vmem>>, %arg2: memref<8x128xi32, #tpu.memory_space<vmem>>, %arg3: memref<8x128xf32, #tpu.memory_space<vmem>>) attributes {dimension_semantics = [#tpu.dimension_semantics<parallel>], iteration_bounds = array<i64: 1>, scalar_prefetch = 0 : i64, scratch_operands = 0 : i64, tpu.core_type = #tpu.core_type<tc>, window_params = [{pipeline_mode = #tpu.pipeline_mode<synchronous>, transform_indices = @transform_0, window_bounds = array<i64: 8, 128>}, {pipeline_mode = #tpu.pipeline_mode<synchronous>, transform_indices = @transform_1, window_bounds = array<i64: 8, 128>}, {transform_indices = @transform_2, window_bounds = array<i64: 8, 128>}]} {
    %c0 = arith.constant 0 : index
    %c0_0 = arith.constant 0 : index
    %0 = vector.load %arg2[%c0, %c0_0] : memref<8x128xi32, #tpu.memory_space<vmem>>, vector<8x128xi32>
    %c1_i32 = arith.constant 1 : i32
    %1 = vector.broadcast %c1_i32 : i32 to vector<8x128xi32>
    %2 = arith.andi %0, %1 : vector<8x128xi32>
    %3 = arith.subi %0, %2 : vector<8x128xi32>
    %4 = arith.sitofp %3 : vector<8x128xi32> to vector<8x128xf32>
    %cst = arith.constant -0.287823141 : f32
    %5 = vector.broadcast %cst : f32 to vector<8x128xf32>
    %6 = arith.mulf %4, %5 : vector<8x128xf32>
    %7 = math.exp %6 : vector<8x128xf32>
    %c0_1 = arith.constant 0 : index
    %c0_2 = arith.constant 0 : index
    %8 = vector.load %arg1[%c0_1, %c0_2] : memref<8x128xf32, #tpu.memory_space<vmem>>, vector<8x128xf32>
    %c32_i32 = arith.constant 32 : i32
    %9 = arith.muli %arg0, %c32_i32 : i32
    %10 = arith.sitofp %9 : i32 to f32
    %11 = vector.broadcast %10 : f32 to vector<8x128xf32>
    %12 = arith.addf %8, %11 : vector<8x128xf32>
    %13 = arith.mulf %12, %7 : vector<8x128xf32>
    %c0_i32 = arith.constant 0 : i32
    %14 = vector.broadcast %c0_i32 : i32 to vector<8x128xi32>
    %15 = arith.cmpi eq, %2, %14 : vector<8x128xi32>
    %16 = math.sin %13 : vector<8x128xf32>
    %17 = math.cos %13 : vector<8x128xf32>
    %18 = arith.select %15, %16, %17 : vector<8x128xi1>, vector<8x128xf32>
    %c0_3 = arith.constant 0 : index
    %c0_4 = arith.constant 0 : index
    %19 = vector.load %arg3[%c0_3, %c0_4] : memref<8x128xf32, #tpu.memory_space<vmem>>, vector<8x128xf32>
    tpu.vector_store %arg3[%c0_3, %c0_4], %18 {strides = array<i32>} : memref<8x128xf32, #tpu.memory_space<vmem>>, vector<8x128xf32>,
    return
  }
  func.func @transform_0(%arg0: i32) -> (i32, i32) {
    %c0_i32 = arith.constant 0 : i32
    %c0_i32_0 = arith.constant 0 : i32
    %c0_i32_1 = arith.constant 0 : i32
    return %c0_i32, %c0_i32_0 : i32, i32
  }
  func.func @transform_1(%arg0: i32) -> (i32, i32) {
    %c0_i32 = arith.constant 0 : i32
    %c0_i32_0 = arith.constant 0 : i32
    %c0_i32_1 = arith.constant 0 : i32
    return %c0_i32, %c0_i32_0 : i32, i32
  }
  func.func @transform_2(%arg0: i32) -> (i32, i32) {
    %c0_i32 = arith.constant 0 : i32
    %c0_i32_0 = arith.constant 0 : i32
    return %arg0, %c0_i32 : i32, i32
  }
}

</mosaic_0001>

<llo_original>
// kernel: tpu_custom_call.1
$region0: #{tpu_custom_call.1}
  #allocation0 [shape = 'u32[]', space=smem, size = 0x4, offset = 0x4, fixed_abs, tag = 'smem constant byte address 0x4 - core index']
  #allocation1 [shape = 'u32[144,128]{1,0:T(1,128)}', space=vmem, size = 0x12000, scoped, tag = 'internal scratch']
  %s0 = inlined_call_operand.hbm [shape: f32[8,128], index: 0, kind: input, shape index: {}]
  %s1 = inlined_call_operand.hbm [shape: s32[8,128], index: 1, kind: input, shape index: {}]
  %s2 = inlined_call_operand.hbm [shape: f32[8,128], index: 2, kind: output, shape index: {}]
  %s3 = sld [smem:[#allocation0]]
  $region26: #{tpu_custom_call.1} parent=0
    _
  %s5 = ssub.s32 1, %s3
  %s6 = scalar_select 0, %s5, %s3
  $region1: #{tpu_custom_call.1} parent=0
    #allocation2 [shape = 'u8[4096]{0}', space=vmem, size = 0x1000, scoped, tag = 'input window, operand 0, single buffered']
    #allocation3 [shape = 's32[1]{0}', space=sflag, size = 0x4, scoped, tag = 'scoped memory for tpu_custom_call.1']
    #allocation4 [shape = 's32[1]{0}', space=sflag, size = 0x4, scoped, tag = 'scoped memory for tpu_custom_call.1']
    #allocation5 [shape = 'u8[4096]{0}', space=vmem, size = 0x1000, scoped, tag = 'input window, operand 1, single buffered']
    #allocation6 [shape = 's32[1]{0}', space=sflag, size = 0x4, scoped, tag = 'scoped memory for tpu_custom_call.1']
    #allocation7 [shape = 'u8[4096]{0}', space=vmem, size = 0x1000, scoped, tag = 'output window, operand 0, single buffered']
    %7 = vsyncpa [#allocation3], 0
    %8 = vsyncpa [#allocation6], 0
    %9 = vsyncpa [#allocation4], 0
    // Predicated region
    $region2: #{tpu_custom_call.1} parent=1 // pred_check
      _
    $region3: #{tpu_custom_call.1} parent=1 // pred_check_branch
      %11 = sbr.rel (0) target = $region5
    $region4: #{tpu_custom_call.1} parent=1 // pred_region
      %s13 = ssub.s32 128, 128
      %14 = vsyncadd [#allocation3], %s13
      %s16 = sshll.u32 [#allocation2], 4
      %s17 = int_to_ptr.vmem [resolvable:$true] %s16
      %19 = dma.hbm_to_vmem [thread:$0]  %s0, 128, %s17, [#allocation3]
    $region5: #{tpu_custom_call.1} parent=1 // pred_fallthru
      _
    // Predicated region
    $region6: #{tpu_custom_call.1} parent=1 // pred_check
      _
    $region7: #{tpu_custom_call.1} parent=1 // pred_check_branch
      %21 = sbr.rel (0) target = $region9
    $region8: #{tpu_custom_call.1} parent=1 // pred_region
      %s23 = ssub.s32 128, 128
      %24 = vsyncadd [#allocation6], %s23
      %s26 = sshll.u32 [#allocation5], 4
      %s27 = int_to_ptr.vmem [resolvable:$true] %s26
      %29 = dma.hbm_to_vmem [thread:$0]  %s1, 128, %s27, [#allocation6]
    $region9: #{tpu_custom_call.1} parent=1 // pred_fallthru
      _
    // Predicated region
    $region10: #{tpu_custom_call.1} parent=1 // pred_check
      _
    $region11: #{tpu_custom_call.1} parent=1 // pred_check_branch
      %31 = sbr.rel (0) target = $region13
    $region12: #{tpu_custom_call.1} parent=1 // pred_region
      %32 = dma.done [#allocation3], 128
    $region13: #{tpu_custom_call.1} parent=1 // pred_fallthru
      _
    // Predicated region
    $region14: #{tpu_custom_call.1} parent=1 // pred_check
      _
    $region15: #{tpu_custom_call.1} parent=1 // pred_check_branch
      %34 = sbr.rel (0) target = $region17
    $region16: #{tpu_custom_call.1} parent=1 // pred_region
      %35 = dma.done [#allocation6], 128
    $region17: #{tpu_custom_call.1} parent=1 // pred_fallthru
      _
    %v36 = vld [vmem:[#allocation5] sm:$0xff]
    %v37 = vand.u32 %v36, 1
    %v38 = vsub.s32 %v36, %v37
    %v39 = vcvt.s32.f32 %v38
    %v40 = vmul.f32 %v39, -0.28782314
    %v41 = vmul.f32 %v40, 1.442695
    %v42 = vpow.pop %v41
    %v43 = vld [vmem:[#allocation2] sm:$0xff]
    %s44 = smul.u32 0, 32
    %s45 = scvt.s32.f32 %s44
    %v46 = vstv %s45
    %v47 = vadd.f32 %v43, %v46
    %v48 = vmul.f32 %v47, %v42
    %vm49 = vcmp.eq.s32.totalorder %v37, 0
    %v50 = vand.u32 2147483647, %v48
    %vm51 = vcmp.le.f32.partialorder %v50, 0.7853982
    %vm52 = vcmp.lt.s32.totalorder %v48, 0
    %v53 = vand.u32 %v48, 2139095040
    %v54 = vshrl.u32 %v53, 23
    %v55 = vsub.s32 %v54, 127
    %v56 = vand.u32 2147483647, %v48
    %v57 = vand.u32 %v56, 8388607
    %v58 = vor.u32 %v57, 8388608
    %v59 = vsub.s32 0, %v58
    %v60 = vadd.s32 %v55, 1
    %vm61 = vcmp.gt.s32.totalorder %v60, 0
    %v62 = vsel %vm61, %v60, 0
    %v63 = vshrl.u32 %v62, 5
    %v64 = vand.u32 %v62, 31
    %v65 = vsub.s32 32, %v64
    %v66 = vshrl.u32 683565275, %v65
    %v67 = vshll.u32 683565275, %v64
    %v68 = vshrl.u32 2475754826, %v65
    %v69 = vor.u32 %v67, %v68
    %v70 = vshll.u32 2475754826, %v64
    %v71 = vshrl.u32 2131351028, %v65
    %v72 = vor.u32 %v70, %v71
    %v73 = vshll.u32 2131351028, %v64
    %v74 = vshrl.u32 2102212464, %v65
    %v75 = vor.u32 %v73, %v74
    %v76 = vshll.u32 2102212464, %v64
    %v77 = vshrl.u32 920167782, %v65
    %v78 = vor.u32 %v76, %v77
    %v79 = vshll.u32 920167782, %v64
    %v80 = vshrl.u32 1326507024, %v65
    %v81 = vor.u32 %v79, %v80
    %vm82 = vcmp.lt.s32.totalorder %v63, 1
    %vm83 = vcmp.lt.s32.totalorder %v63, 2
    %vm84 = vcmp.lt.s32.totalorder %v63, 3
    %vm85 = vcmp.lt.s32.totalorder %v63, 4
    %v86 = vsel %vm82, %v66, %v69
    %v87 = vsel %vm85, %v75, 2102212464
    %v88 = vsel %vm84, %v72, %v87
    %v89 = vsel %vm83, %v86, %v88
    %v90 = vsel %vm82, %v69, %v72
    %v91 = vsel %vm85, %v78, 920167782
    %v92 = vsel %vm84, %v75, %v91
    %v93 = vsel %vm83, %v90, %v92
    %v94 = vsel %vm82, %v72, %v75
    %v95 = vsel %vm85, %v81, 1326507024
    %v96 = vsel %vm84, %v78, %v95
    %v97 = vsel %vm83, %v94, %v96
    %v98 = vshll.u32 %v58, 8
    %v99 = vmul.u32.u64.compose %v98, %v97
    %v100 = vextract.low.u32 %v99
    %v101 = vextract.high.u32 %v99
    %v102 = vmul.u32.u64.compose %v98, %v93
    %v103 = vextract.low.u32 %v102
    %v104 = vextract.high.u32 %v102
    %v105 = vmul.u32 %v98, %v89
    %v106 = vadd.s32 %v101, %v103
    %vm107 = vc.u32 %v101, %v103
    %v108 = vadd.s32 %v104, 1
    %v109 = vsel %vm107, %v108, %v104
    %v110 = vadd.s32 %v105, %v109
    %v111 = vadd.s32 %v110, 536870912
    %v112 = vshrl.u32 %v111, 30
    %v113 = vshll.u32 %v112, 30
    %v114 = vsub.s32 %v110, %v113
    %vm115 = vcmp.lt.s32.totalorder %v114, 0
    %v116 = vsub.s32 0, %v114
    %v117 = vsel %vm115, %v116, %v114
    %v118 = vclz %v117
    %v119 = vsub.s32 %v118, 2
    %vm120 = vcmp.gt.s32.totalorder 0, %v119
    %v121 = vsel %vm120, 0, %v119
    %v122 = vsub.s32 32, %v121
    %v123 = vshll.u32 %v114, %v121
    %v124 = vshrl.u32 %v106, %v122
    %v125 = vor.u32 %v123, %v124
    %v126 = vsub.s32 4294967266, %v121
    %v127 = vadd.s32 %v126, 127
    %v128 = vshll.u32 %v127, 23
    %v129 = vor.u32 4788187, %v128
    %v130 = vand.u32 2147483647, %v129
    %v132 = vcvt.s32.f32 %v125
    %v133 = vmul.f32 %v132, %v130
    %v134 = vxor.u32 %v133, 2147483648
    %v135 = vsel %vm52, %v134, %v133
    %v136 = vsub.s32 4, %v112
    %v137 = vsel %vm52, %v136, %v112
    %v138 = vsel %vm51, %v48, %v135
    %v139 = vsel %vm51, 0, %v137
    %v140 = vcosq.f32.pop %v138
    %v141 = vsinq.f32.pop %v138
    %vm142 = vweird.f32 %v48
    %v143 = vadd.s32 %v139, 3
    %v144 = vand.u32 %v143, 3
    %vm145 = vcmp.lt.s32.totalorder %v144, 2
    %vm146 = vcmp.eq.s32.totalorder %v144, 0
    %v147 = vxor.u32 %v141, 2147483648
    %v148 = vsel %vm146, %v140, %v147
    %vm149 = vcmp.eq.s32.totalorder %v144, 2
    %v150 = vxor.u32 %v140, 2147483648
    %v151 = vsel %vm149, %v150, %v141
    %v152 = vsel %vm145, %v148, %v151
    %v153 = vsel %vm142, nan, %v152
    %v154 = vand.u32 2147483647, %v48
    %vm155 = vcmp.le.f32.partialorder %v154, 0.7853982
    %vm156 = vcmp.lt.s32.totalorder %v48, 0
    %v157 = vand.u32 %v48, 2139095040
    %v158 = vshrl.u32 %v157, 23
    %v159 = vsub.s32 %v158, 127
    %v160 = vand.u32 2147483647, %v48
    %v161 = vand.u32 %v160, 8388607
    %v162 = vor.u32 %v161, 8388608
    %v163 = vsub.s32 0, %v162
    %v164 = vadd.s32 %v159, 1
    %vm165 = vcmp.gt.s32.totalorder %v164, 0
    %v166 = vsel %vm165, %v164, 0
    %v167 = vshrl.u32 %v166, 5
    %v168 = vand.u32 %v166, 31
    %v169 = vsub.s32 32, %v168
    %v170 = vshrl.u32 683565275, %v169
    %v171 = vshll.u32 683565275, %v168
    %v172 = vshrl.u32 2475754826, %v169
    %v173 = vor.u32 %v171, %v172
    %v174 = vshll.u32 2475754826, %v168
    %v175 = vshrl.u32 2131351028, %v169
    %v176 = vor.u32 %v174, %v175
    %v177 = vshll.u32 2131351028, %v168
    %v178 = vshrl.u32 2102212464, %v169
    %v179 = vor.u32 %v177, %v178
    %v180 = vshll.u32 2102212464, %v168
    %v181 = vshrl.u32 920167782, %v169
    %v182 = vor.u32 %v180, %v181
    %v183 = vshll.u32 920167782, %v168
    %v184 = vshrl.u32 1326507024, %v169
    %v185 = vor.u32 %v183, %v184
    %vm186 = vcmp.lt.s32.totalorder %v167, 1
    %vm187 = vcmp.lt.s32.totalorder %v167, 2
    %vm188 = vcmp.lt.s32.totalorder %v167, 3
    %vm189 = vcmp.lt.s32.totalorder %v167, 4
    %v190 = vsel %vm186, %v170, %v173
    %v191 = vsel %vm189, %v179, 2102212464
    %v192 = vsel %vm188, %v176, %v191
    %v193 = vsel %vm187, %v190, %v192
    %v194 = vsel %vm186, %v173, %v176
    %v195 = vsel %vm189, %v182, 920167782
    %v196 = vsel %vm188, %v179, %v195
    %v197 = vsel %vm187, %v194, %v196
    %v198 = vsel %vm186, %v176, %v179
    %v199 = vsel %vm189, %v185, 1326507024
    %v200 = vsel %vm188, %v182, %v199
    %v201 = vsel %vm187, %v198, %v200
    %v202 = vshll.u32 %v162, 8
    %v203 = vmul.u32.u64.compose %v202, %v201
    %v204 = vextract.low.u32 %v203
    %v205 = vextract.high.u32 %v203
    %v206 = vmul.u32.u64.compose %v202, %v197
    %v207 = vextract.low.u32 %v206
    %v208 = vextract.high.u32 %v206
    %v209 = vmul.u32 %v202, %v193
    %v210 = vadd.s32 %v205, %v207
    %vm211 = vc.u32 %v205, %v207
    %v212 = vadd.s32 %v208, 1
    %v213 = vsel %vm211, %v212, %v208
    %v214 = vadd.s32 %v209, %v213
    %v215 = vadd.s32 %v214, 536870912
    %v216 = vshrl.u32 %v215, 30
    %v217 = vshll.u32 %v216, 30
    %v218 = vsub.s32 %v214, %v217
    %vm219 = vcmp.lt.s32.totalorder %v218, 0
    %v220 = vsub.s32 0, %v218
    %v221 = vsel %vm219, %v220, %v218
    %v222 = vclz %v221
    %v223 = vsub.s32 %v222, 2
    %vm224 = vcmp.gt.s32.totalorder 0, %v223
    %v225 = vsel %vm224, 0, %v223
    %v226 = vsub.s32 32, %v225
    %v227 = vshll.u32 %v218, %v225
    %v228 = vshrl.u32 %v210, %v226
    %v229 = vor.u32 %v227, %v228
    %v230 = vsub.s32 4294967266, %v225
    %v231 = vadd.s32 %v230, 127
    %v232 = vshll.u32 %v231, 23
    %v233 = vor.u32 4788187, %v232
    %v234 = vand.u32 2147483647, %v233
    %v236 = vcvt.s32.f32 %v229
    %v237 = vmul.f32 %v236, %v234
    %v238 = vxor.u32 %v237, 2147483648
    %v239 = vsel %vm156, %v238, %v237
    %v240 = vsub.s32 4, %v216
    %v241 = vsel %vm156, %v240, %v216
    %v242 = vsel %vm155, %v48, %v239
    %v243 = vsel %vm155, 0, %v241
    %v244 = vcosq.f32.pop %v242
    %v245 = vsinq.f32.pop %v242
    %vm246 = vweird.f32 %v48
    %v247 = vand.u32 %v243, 3
    %vm248 = vcmp.lt.s32.totalorder %v247, 2
    %vm249 = vcmp.eq.s32.totalorder %v247, 0
    %v250 = vxor.u32 %v245, 2147483648
    %v251 = vsel %vm249, %v244, %v250
    %vm252 = vcmp.eq.s32.totalorder %v247, 2
    %v253 = vxor.u32 %v244, 2147483648
    %v254 = vsel %vm252, %v253, %v245
    %v255 = vsel %vm248, %v251, %v254
    %v256 = vsel %vm246, nan, %v255
    %v257 = vsel %vm49, %v153, %v256
    %258 = vst [vmem:[#allocation7] sm:$0xff] %v257
    // Predicated region
    $region18: #{tpu_custom_call.1} parent=1 // pred_check
      _
    $region19: #{tpu_custom_call.1} parent=1 // pred_check_branch
      %260 = sbr.rel (0) target = $region21
    $region20: #{tpu_custom_call.1} parent=1 // pred_region
      %s262 = ssub.s32 128, 128
      %263 = vsyncadd [#allocation4], %s262
      %s265 = sshll.u32 [#allocation7], 4
      %s266 = int_to_ptr.vmem [resolvable:$true] %s265
      %268 = dma.vmem_to_hbm [thread:$0]  %s266, 128, %s2, [#allocation4]
    $region21: #{tpu_custom_call.1} parent=1 // pred_fallthru
      _
    // Predicated region
    $region22: #{tpu_custom_call.1} parent=1 // pred_check
      _
    $region23: #{tpu_custom_call.1} parent=1 // pred_check_branch
      %270 = sbr.rel (0) target = $region25
    $region24: #{tpu_custom_call.1} parent=1 // pred_region
      %271 = dma.done [#allocation4], 128
    $region25: #{tpu_custom_call.1} parent=1 // pred_fallthru
      _
    %272 = vsyncpa [#allocation3], 1
    %273 = vsyncpa [#allocation6], 1
    %274 = vsyncpa [#allocation4], 1

</llo_original>
